<compile_context>
chip_gen: v7x
topology: tpu7x:2x2x1
jax: 0.10.0
libtpu: 0.0.40
codegen_flags: <defaults>
</compile_context>

<pallas_src>
import jax
import jax.numpy as jnp
from jax.experimental import pallas as pl
from jax.experimental.pallas import tpu as pltpu


def _critic_kernel(x_ref, w1_ref, b1_ref, gate_ref,
                   w2_ref, b2_ref, w3_ref, b3_ref, out_ref):
    # ---- Layer 1 + action passthrough: one MXU matmul, bf16 in / f32 acc.
    # x = [s | a | 0], W1_aug = [[W1, 0], [0, I_A], [0, 0]]  (zero-padded).
    z = jnp.dot(x_ref[...].astype(jnp.bfloat16), w1_ref[...],
                preferred_element_type=jnp.float32)          # (TB, N1P) f32
    z = z + b1_ref[...]                                      # b1 is 0 on pads

    # Selective ReLU: gate == 1.0 on the action passthrough lanes (keep sign),
    # 0.0 elsewhere.  max(z, z*gate) == z where gate==1, relu(z) where gate==0.
    y1 = jnp.maximum(z, z * gate_ref[...])

    # ---- Layer 2: [relu(s@W1+b1) | a | 0] @ [W2 ; 0]  — single MXU matmul.
    y2 = jnp.dot(y1.astype(jnp.bfloat16), w2_ref[...],
                 preferred_element_type=jnp.float32)         # (TB, N2P) f32
    y2 = jnp.maximum(y2 + b2_ref[...], 0.0)

    # ---- Layer 3 (N == 1): elementwise mul + lane reduce (VPU + XLU) instead
    # of a 1-column MXU matmul.  Padded w3 lanes are zero -> exact.
    out = jnp.sum(y2 * w3_ref[...], axis=-1, keepdims=True)  # (TB, 1) f32
    out_ref[...] = out + b3_ref[0, 0]


def _round_up(x: int, m: int) -> int:
    return (x + m - 1) // m * m


def critic_forward(s, a, kernel_params, *, block_b: int = 1024):
    """s: (B, states) f32, a: (B, actions) f32 -> (B, 1) f32."""
    w1a, b1a, gate, w2p, b2p, w3r, b3 = kernel_params
    B = s.shape[0]
    K1P, N1P = w1a.shape
    N2P = w2p.shape[1]

    # Single fused input [s | a], zero-padded in the feature dim to K1P.
    x = jnp.concatenate([s, a], axis=1).astype(jnp.float32)

    # Batch tiling: sublane-aligned tile; pad the batch up to a tile multiple.
    TB = min(block_b, _round_up(B, 8))
    B_pad = _round_up(B, TB)
    x = jnp.pad(x, ((0, B_pad - B), (0, K1P - x.shape[1])))

    def const2d(shape):       # weights: same block every iter -> VMEM resident
        return pl.BlockSpec(shape, lambda i: (0, 0))

    out = pl.pallas_call(
        _critic_kernel,
        out_shape=jax.ShapeDtypeStruct((B_pad, 1), jnp.float32),
        grid=(B_pad // TB,),
        in_specs=[
            pl.BlockSpec((TB, K1P), lambda i: (i, 0)),          # x (batch-tiled)
            const2d((K1P, N1P)),                                # W1_aug (bf16)
            const2d((1, N1P)),                                  # b1 (padded 0)
            const2d((1, N1P)),                                  # relu gate row
            const2d((N1P, N2P)),                                # W2 padded (bf16)
            const2d((1, N2P)),                                  # b2 (padded 0)
            const2d((1, N2P)),                                  # W3 row (padded 0)
            pl.BlockSpec(memory_space=pltpu.MemorySpace.SMEM),  # b3 scalar
        ],
        out_specs=pl.BlockSpec((TB, 1), lambda i: (i, 0)),
        compiler_params=pltpu.CompilerParams(
            # On v7x, benchmark pltpu.CORE_PARALLEL here for large B.
            dimension_semantics=("parallel",)),
    )(x, w1a, b1a, gate, w2p, b2p, w3r, b3)
    return out[:B]


def init_params(key, states=8, actions=2, n1=400, n2=200):
    """Logical params mimicking nn.Linear defaults (U[-1/sqrt(fan_in), ...]),
    stored transposed as (in_features, out_features)."""
    ks = jax.random.split(key, 6)

    def uni(k, shape, fan_in):
        bound = 1.0 / jnp.sqrt(jnp.float32(fan_in))
        return jax.random.uniform(k, shape, jnp.float32, -bound, bound)

    w1 = uni(ks[0], (states, n1), states)                  # linear_1.weight.T
    b1 = uni(ks[1], (n1,), states)
    w2 = uni(ks[2], (n1 + actions, n2), n1 + actions)      # linear_2.weight.T
    b2 = uni(ks[3], (n2,), n1 + actions)
    w3 = uni(ks[4], (n2, 1), n2)                           # linear_3.weight.T
    b3 = uni(ks[5], (1, 1), n2)
    return (w1, b1, w2, b2, w3, b3)


def pack_params(params, states=8, actions=2):
    """Build the padded / augmented operands consumed by the kernel.

    Layout (exact rewrite of the PyTorch forward):
      x      = [s | a | 0]                       (B, K1P)
      W1_aug = [[W1, 0], [0, I_A], [0, 0]]       (K1P, N1P)  bf16
      gate   = 1.0 on cols n1..n1+A-1 else 0.0   (ReLU skips action lanes)
      W2_pad = [W2 ; 0]                          (N1P, N2P)  bf16
    Padded bias / w3 entries are zero, so padded lanes never leak into out.
    """
    w1, b1, w2, b2, w3, b3 = params
    n1, n2 = w1.shape[1], w2.shape[1]
    k1p = _round_up(states + actions, 16)    # bf16 sublane tile
    n1p = _round_up(n1 + actions, 128)       # 402 -> 512
    n2p = _round_up(n2, 128)                 # 200 -> 256

    w1a = jnp.zeros((k1p, n1p), jnp.float32)
    w1a = w1a.at[:states, :n1].set(w1)
    w1a = w1a.at[states:states + actions, n1:n1 + actions].set(
        jnp.eye(actions, dtype=jnp.float32))
    w1a = w1a.astype(jnp.bfloat16)                         # MXU operand

    b1a = jnp.zeros((1, n1p), jnp.float32).at[0, :n1].set(b1)
    gate = jnp.zeros((1, n1p), jnp.float32).at[0, n1:n1 + actions].set(1.0)

    w2p = jnp.zeros((n1p, n2p), jnp.float32).at[:n1 + actions, :n2].set(w2)
    w2p = w2p.astype(jnp.bfloat16)                         # MXU operand

    b2p = jnp.zeros((1, n2p), jnp.float32).at[0, :n2].set(b2)
    w3r = jnp.zeros((1, n2p), jnp.float32).at[0, :n2].set(w3[:, 0])
    return (w1a, b1a, gate, w2p, b2p, w3r, b3)


if __name__ == "__main__":
    key = jax.random.PRNGKey(0)
    k_s, k_a, k_p = jax.random.split(key, 3)

    B, STATES, ACTIONS = 2, 8, 2     # CriticNet(input=8); linear_2 in = 402
    s = jax.random.normal(k_s, (B, STATES), jnp.float32)
    a = jax.random.normal(k_a, (B, ACTIONS), jnp.float32)

    params = init_params(k_p, STATES, ACTIONS)
    kparams = pack_params(params, STATES, ACTIONS)

    out = critic_forward(s, a, kparams)
    jax.block_until_ready(out)
    assert out.shape == (B, 1)

    w1, b1, w2, b2, w3, b3 = params

    # Reference 1: identical math to the kernel (bf16 matmuls, f32 accumulate).
    y1 = jnp.maximum(
        jnp.dot(s.astype(jnp.bfloat16), w1.astype(jnp.bfloat16),
                preferred_element_type=jnp.float32) + b1, 0.0)
    a_b = a.astype(jnp.bfloat16).astype(jnp.float32)       # action passthrough
    h = jnp.concatenate([y1, a_b], axis=1)
    y2 = jnp.maximum(
        jnp.dot(h.astype(jnp.bfloat16), w2.astype(jnp.bfloat16),
                preferred_element_type=jnp.float32) + b2, 0.0)
    ref_bf16 = jnp.sum(y2 * w3[:, 0], axis=-1, keepdims=True) + b3
    assert jnp.allclose(out, ref_bf16, atol=1e-3, rtol=1e-3), (out, ref_bf16)

    # Reference 2: pure-f32 PyTorch math (fidelity check, bf16-level tolerance).
    y1f = jnp.maximum(s @ w1 + b1, 0.0)
    y2f = jnp.maximum(jnp.concatenate([y1f, a], axis=1) @ w2 + b2, 0.0)
    ref_f32 = y2f @ w3 + b3
    assert jnp.allclose(out, ref_f32, atol=5e-2, rtol=5e-2), (out, ref_f32)

    print("KERNEL_OK")
</pallas_src>

<mosaic_0001>
module attributes {stable_mosaic.version = 11 : i64} {
  func.func @_critic_kernel(%arg0: i32, %arg1: memref<8x16xf32, #tpu.memory_space<vmem>>, %arg2: memref<16x512xbf16, #tpu.memory_space<vmem>>, %arg3: memref<1x512xf32, #tpu.memory_space<vmem>>, %arg4: memref<1x512xf32, #tpu.memory_space<vmem>>, %arg5: memref<512x256xbf16, #tpu.memory_space<vmem>>, %arg6: memref<1x256xf32, #tpu.memory_space<vmem>>, %arg7: memref<1x256xf32, #tpu.memory_space<vmem>>, %arg8: memref<1x1xf32, #tpu.memory_space<smem>>, %arg9: memref<8x1xf32, #tpu.memory_space<vmem>>) attributes {dimension_semantics = [#tpu.dimension_semantics<parallel>], iteration_bounds = array<i64: 1>, scalar_prefetch = 0 : i64, scratch_operands = 0 : i64, tpu.core_type = #tpu.core_type<tc>, window_params = [{transform_indices = @transform_0, window_bounds = array<i64: 8, 16>}, {pipeline_mode = #tpu.pipeline_mode<synchronous>, transform_indices = @transform_1, window_bounds = array<i64: 16, 512>}, {pipeline_mode = #tpu.pipeline_mode<synchronous>, transform_indices = @transform_2, window_bounds = array<i64: 1, 512>}, {pipeline_mode = #tpu.pipeline_mode<synchronous>, transform_indices = @transform_3, window_bounds = array<i64: 1, 512>}, {pipeline_mode = #tpu.pipeline_mode<synchronous>, transform_indices = @transform_4, window_bounds = array<i64: 512, 256>}, {pipeline_mode = #tpu.pipeline_mode<synchronous>, transform_indices = @transform_5, window_bounds = array<i64: 1, 256>}, {pipeline_mode = #tpu.pipeline_mode<synchronous>, transform_indices = @transform_6, window_bounds = array<i64: 1, 256>}, {transform_indices = @transform_7, window_bounds = array<i64: 1, 1>}, {transform_indices = @transform_8, window_bounds = array<i64: 8, 1>}]} {
    %c0 = arith.constant 0 : index
    %c0_0 = arith.constant 0 : index
    %0 = vector.load %arg1[%c0, %c0_0] : memref<8x16xf32, #tpu.memory_space<vmem>>, vector<8x16xf32>
    %1 = arith.truncf %0 : vector<8x16xf32> to vector<8x16xbf16>
    %c0_1 = arith.constant 0 : index
    %c0_2 = arith.constant 0 : index
    %2 = vector.load %arg2[%c0_1, %c0_2] : memref<16x512xbf16, #tpu.memory_space<vmem>>, vector<16x512xbf16>
    %cst = arith.constant dense<0.000000e+00> : vector<8x512xf32>
    %3 = tpu.matmul %1, %2, %cst {dimension_numbers = #tpu.dot_dimension_numbers<[1], [0], [0], [1], [0, 0, 1, 1], [], []>} : vector<8x16xbf16>, vector<16x512xbf16>, vector<8x512xf32> -> vector<8x512xf32>
    %c0_3 = arith.constant 0 : index
    %c0_4 = arith.constant 0 : index
    %4 = vector.load %arg3[%c0_3, %c0_4] : memref<1x512xf32, #tpu.memory_space<vmem>>, vector<1x512xf32>
    %5 = vector.broadcast %4 : vector<1x512xf32> to vector<8x512xf32>
    %6 = arith.addf %3, %5 : vector<8x512xf32>
    %c0_5 = arith.constant 0 : index
    %c0_6 = arith.constant 0 : index
    %7 = vector.load %arg4[%c0_5, %c0_6] : memref<1x512xf32, #tpu.memory_space<vmem>>, vector<1x512xf32>
    %8 = vector.broadcast %7 : vector<1x512xf32> to vector<8x512xf32>
    %9 = arith.mulf %6, %8 : vector<8x512xf32>
    %10 = arith.maximumf %6, %9 : vector<8x512xf32>
    %11 = arith.truncf %10 : vector<8x512xf32> to vector<8x512xbf16>
    %c0_7 = arith.constant 0 : index
    %c0_8 = arith.constant 0 : index
    %12 = vector.load %arg5[%c0_7, %c0_8] : memref<512x256xbf16, #tpu.memory_space<vmem>>, vector<512x256xbf16>
    %cst_9 = arith.constant dense<0.000000e+00> : vector<8x256xf32>
    %13 = tpu.matmul %11, %12, %cst_9 {dimension_numbers = #tpu.dot_dimension_numbers<[1], [0], [0], [1], [0, 0, 1, 1], [], []>} : vector<8x512xbf16>, vector<512x256xbf16>, vector<8x256xf32> -> vector<8x256xf32>
    %c0_10 = arith.constant 0 : index
    %c0_11 = arith.constant 0 : index
    %14 = vector.load %arg6[%c0_10, %c0_11] : memref<1x256xf32, #tpu.memory_space<vmem>>, vector<1x256xf32>
    %15 = vector.broadcast %14 : vector<1x256xf32> to vector<8x256xf32>
    %16 = arith.addf %13, %15 : vector<8x256xf32>
    %cst_12 = arith.constant 0.000000e+00 : f32
    %17 = vector.broadcast %cst_12 : f32 to vector<8x256xf32>
    %18 = arith.maximumf %16, %17 : vector<8x256xf32>
    %c0_13 = arith.constant 0 : index
    %c0_14 = arith.constant 0 : index
    %19 = vector.load %arg7[%c0_13, %c0_14] : memref<1x256xf32, #tpu.memory_space<vmem>>, vector<1x256xf32>
    %20 = vector.broadcast %19 : vector<1x256xf32> to vector<8x256xf32>
    %21 = arith.mulf %18, %20 : vector<8x256xf32>
    %cst_15 = arith.constant dense<0.000000e+00> : vector<8xf32>
    %22 = vector.multi_reduction <add>, %21, %cst_15 [1] : vector<8x256xf32> to vector<8xf32>
    %23 = vector.shape_cast %22 : vector<8xf32> to vector<8x1xf32>
    %c0_16 = arith.constant 0 : index
    %c0_17 = arith.constant 0 : index
    %24 = memref.load %arg8[%c0_16, %c0_17] : memref<1x1xf32, #tpu.memory_space<smem>>
    %25 = vector.broadcast %24 : f32 to vector<8x1xf32>
    %26 = arith.addf %23, %25 : vector<8x1xf32>
    %c0_18 = arith.constant 0 : index
    %c0_19 = arith.constant 0 : index
    %27 = vector.load %arg9[%c0_18, %c0_19] : memref<8x1xf32, #tpu.memory_space<vmem>>, vector<8x1xf32>
    tpu.vector_store %arg9[%c0_18, %c0_19], %26 {strides = array<i32>} : memref<8x1xf32, #tpu.memory_space<vmem>>, vector<8x1xf32>,
    return
  }
  func.func @transform_0(%arg0: i32) -> (i32, i32) {
    %c0_i32 = arith.constant 0 : i32
    %c0_i32_0 = arith.constant 0 : i32
    return %arg0, %c0_i32 : i32, i32
  }
  func.func @transform_1(%arg0: i32) -> (i32, i32) {
    %c0_i32 = arith.constant 0 : i32
    %c0_i32_0 = arith.constant 0 : i32
    %c0_i32_1 = arith.constant 0 : i32
    return %c0_i32, %c0_i32_0 : i32, i32
  }
  func.func @transform_2(%arg0: i32) -> (i32, i32) {
    %c0_i32 = arith.constant 0 : i32
    %c0_i32_0 = arith.constant 0 : i32
    %c0_i32_1 = arith.constant 0 : i32
    return %c0_i32, %c0_i32_0 : i32, i32
  }
  func.func @transform_3(%arg0: i32) -> (i32, i32) {
    %c0_i32 = arith.constant 0 : i32
    %c0_i32_0 = arith.constant 0 : i32
    %c0_i32_1 = arith.constant 0 : i32
    return %c0_i32, %c0_i32_0 : i32, i32
  }
  func.func @transform_4(%arg0: i32) -> (i32, i32) {
    %c0_i32 = arith.constant 0 : i32
    %c0_i32_0 = arith.constant 0 : i32
    %c0_i32_1 = arith.constant 0 : i32
    return %c0_i32, %c0_i32_0 : i32, i32
  }
  func.func @transform_5(%arg0: i32) -> (i32, i32) {
    %c0_i32 = arith.constant 0 : i32
    %c0_i32_0 = arith.constant 0 : i32
    %c0_i32_1 = arith.constant 0 : i32
    return %c0_i32, %c0_i32_0 : i32, i32
  }
  func.func @transform_6(%arg0: i32) -> (i32, i32) {
    %c0_i32 = arith.constant 0 : i32
    %c0_i32_0 = arith.constant 0 : i32
    %c0_i32_1 = arith.constant 0 : i32
    return %c0_i32, %c0_i32_0 : i32, i32
  }
  func.func @transform_7(%arg0: i32) -> (i32, i32) {
    %c0_i32 = arith.constant 0 : i32
    %c0_i32_0 = arith.constant 0 : i32
    %c0_i32_1 = arith.constant 0 : i32
    return %c0_i32, %c0_i32_0 : i32, i32
  }
  func.func @transform_8(%arg0: i32) -> (i32, i32) {
    %c0_i32 = arith.constant 0 : i32
    %c0_i32_0 = arith.constant 0 : i32
    return %arg0, %c0_i32 : i32, i32
  }
}

</mosaic_0001>

<llo_original>
// kernel: tpu_custom_call.1
$region0: #{tpu_custom_call.1}
  #allocation0 [shape = 'u32[]', space=smem, size = 0x4, offset = 0x4, fixed_abs, tag = 'smem constant byte address 0x4 - core index']
  #allocation1 [shape = 'u32[144,128]{1,0:T(1,128)}', space=vmem, size = 0x12000, scoped, tag = 'internal scratch']
  #allocation2 [shape = 'f32[1,1]{1,0:T(1,128)S(6)}', space=smem, size = 0x200, scoped, tag = 'scoped memory for tpu_custom_call.1']
  %s0 = inlined_call_operand.hbm [shape: f32[8,16], index: 0, kind: input, shape index: {}]
  %s1 = inlined_call_operand.hbm [shape: bf16[16,512], index: 1, kind: input, shape index: {}]
  %s2 = inlined_call_operand.vmem [shape: f32[1,512], index: 2, kind: input, shape index: {}]
  %s3 = inlined_call_operand.vmem [shape: f32[1,512], index: 3, kind: input, shape index: {}]
  %s4 = inlined_call_operand.hbm [shape: bf16[512,256], index: 4, kind: input, shape index: {}]
  %s5 = inlined_call_operand.vmem [shape: f32[1,256], index: 5, kind: input, shape index: {}]
  %s6 = inlined_call_operand.vmem [shape: f32[1,256], index: 6, kind: input, shape index: {}]
  %s7 = inlined_call_operand.<no memory space> [shape: f32[1,1], index: 7, kind: input, shape index: {}]
  %s8 = inlined_call_operand.vmem [shape: f32[8,1], index: 8, kind: output, shape index: {}]
  %s9 = sld [smem:[#allocation0]]
  $region54: #{tpu_custom_call.1} parent=0
    _
  %s11 = ssub.s32 1, %s9
  %s12 = scalar_select 0, %s11, %s9
  %13 = sst [smem:[#allocation2]] %s7
  $region1: #{tpu_custom_call.1} parent=0
    #allocation3 [shape = 'u8[4096]{0}', space=vmem, size = 0x1000, scoped, tag = 'input window, operand 0, single buffered']
    #allocation4 [shape = 's32[1]{0}', space=sflag, size = 0x4, scoped, tag = 'scoped memory for tpu_custom_call.1']
    #allocation5 [shape = 'u8[16384]{0}', space=vmem, size = 0x4000, scoped, tag = 'input window, operand 1, single buffered']
    #allocation6 [shape = 's32[1]{0}', space=sflag, size = 0x4, scoped, tag = 'scoped memory for tpu_custom_call.1']
    #allocation7 [shape = 'u8[262144]{0}', space=vmem, size = 0x40000, scoped, tag = 'input window, operand 4, single buffered']
    %14 = vsyncpa [#allocation4], 0
    %15 = vsyncpa [#allocation6], 0
    // Predicated region
    $region2: #{tpu_custom_call.1} parent=1 // pred_check
      _
    $region3: #{tpu_custom_call.1} parent=1 // pred_check_branch
      %17 = sbr.rel (0) target = $region5
    $region4: #{tpu_custom_call.1} parent=1 // pred_region
      %s19 = ssub.s32 128, 128
      %20 = vsyncadd [#allocation4], %s19
      %s22 = sshll.u32 [#allocation3], 4
      %s23 = int_to_ptr.vmem [resolvable:$true] %s22
      %25 = dma.hbm_to_vmem [thread:$0]  %s0, 128, %s23, [#allocation4]
    $region5: #{tpu_custom_call.1} parent=1 // pred_fallthru
      _
    // Predicated region
    $region6: #{tpu_custom_call.1} parent=1 // pred_check
      _
    $region7: #{tpu_custom_call.1} parent=1 // pred_check_branch
      %27 = sbr.rel (0) target = $region9
    $region8: #{tpu_custom_call.1} parent=1 // pred_region
      %s29 = ssub.s32 512, 512
      %30 = vsyncadd [#allocation6], %s29
      %s31 = sshll.u32 [#allocation5], 4
      %s32 = int_to_ptr.vmem [resolvable:$true] %s31
      %37 = dma.hbm_to_vmem [thread:$0]  %s1, 512, %s32, [#allocation6], 256, 256, 16
    $region9: #{tpu_custom_call.1} parent=1 // pred_fallthru
      _
    // Predicated region
    $region10: #{tpu_custom_call.1} parent=1 // pred_check
      _
    $region11: #{tpu_custom_call.1} parent=1 // pred_check_branch
      %39 = sbr.rel (0) target = $region13
    $region12: #{tpu_custom_call.1} parent=1 // pred_region
      _
    $region13: #{tpu_custom_call.1} parent=1 // pred_fallthru
      _
    // Predicated region
    $region14: #{tpu_custom_call.1} parent=1 // pred_check
      _
    $region15: #{tpu_custom_call.1} parent=1 // pred_check_branch
      %41 = sbr.rel (0) target = $region17
    $region16: #{tpu_custom_call.1} parent=1 // pred_region
      _
    $region17: #{tpu_custom_call.1} parent=1 // pred_fallthru
      _
    // Predicated region
    $region18: #{tpu_custom_call.1} parent=1 // pred_check
      _
    $region19: #{tpu_custom_call.1} parent=1 // pred_check_branch
      %43 = sbr.rel (0) target = $region21
    $region20: #{tpu_custom_call.1} parent=1 // pred_region
      %s45 = ssub.s32 8192, 8192
      %46 = vsyncadd [#allocation6], %s45
      %s47 = sshll.u32 [#allocation7], 4
      %s48 = int_to_ptr.vmem [resolvable:$true] %s47
      %53 = dma.hbm_to_vmem [thread:$0]  %s4, 8192, %s48, [#allocation6], 128, 128, 8
    $region21: #{tpu_custom_call.1} parent=1 // pred_fallthru
      _
    // Predicated region
    $region22: #{tpu_custom_call.1} parent=1 // pred_check
      _
    $region23: #{tpu_custom_call.1} parent=1 // pred_check_branch
      %55 = sbr.rel (0) target = $region25
    $region24: #{tpu_custom_call.1} parent=1 // pred_region
      _
    $region25: #{tpu_custom_call.1} parent=1 // pred_fallthru
      _
    // Predicated region
    $region26: #{tpu_custom_call.1} parent=1 // pred_check
      _
    $region27: #{tpu_custom_call.1} parent=1 // pred_check_branch
      %57 = sbr.rel (0) target = $region29
    $region28: #{tpu_custom_call.1} parent=1 // pred_region
      _
    $region29: #{tpu_custom_call.1} parent=1 // pred_fallthru
      _
    // Predicated region
    $region30: #{tpu_custom_call.1} parent=1 // pred_check
      _
    $region31: #{tpu_custom_call.1} parent=1 // pred_check_branch
      %59 = sbr.rel (0) target = $region33
    $region32: #{tpu_custom_call.1} parent=1 // pred_region
      _
    $region33: #{tpu_custom_call.1} parent=1 // pred_fallthru
      _
    // Predicated region
    $region34: #{tpu_custom_call.1} parent=1 // pred_check
      _
    $region35: #{tpu_custom_call.1} parent=1 // pred_check_branch
      %61 = sbr.rel (0) target = $region37
    $region36: #{tpu_custom_call.1} parent=1 // pred_region
      %62 = dma.done [#allocation4], 128
    $region37: #{tpu_custom_call.1} parent=1 // pred_fallthru
      _
    // Predicated region
    $region38: #{tpu_custom_call.1} parent=1 // pred_check
      _
    $region39: #{tpu_custom_call.1} parent=1 // pred_check_branch
      %64 = sbr.rel (0) target = $region41
    $region40: #{tpu_custom_call.1} parent=1 // pred_region
      %65 = dma.done [#allocation6], 512
    $region41: #{tpu_custom_call.1} parent=1 // pred_fallthru
      _
    // Predicated region
    $region42: #{tpu_custom_call.1} parent=1 // pred_check
      _
    $region43: #{tpu_custom_call.1} parent=1 // pred_check_branch
      %67 = sbr.rel (0) target = $region45
    $region44: #{tpu_custom_call.1} parent=1 // pred_region
      %68 = dma.done [#allocation6], 8192
    $region45: #{tpu_custom_call.1} parent=1 // pred_fallthru
      _
    %v70 = vld [vmem:[#allocation3] sm:$0xff]
    %v71 = vpack.c.bf16 %v70, %v70
    %v72 = vld [vmem:[#allocation5] sm:$0xff]
    %v73 = vld [vmem:[#allocation5 + $0x8] sm:$0xff]
    %v74 = vld [vmem:[#allocation5 + $0x10] sm:$0xff]
    %v75 = vld [vmem:[#allocation5 + $0x18] sm:$0xff]
    %v76 = vld [vmem:[%s2] sm:$0xf]
    %v78 = vlaneseq
    %v79 = vshrl.u32 %v78, 7
    %v80 = vsub.s32 0, %v79
    %v81 = vrot.slane %v76, %v80
    %v82 = vlaneseq
    %v83 = vshrl.u32 %v82, 7
    %v84 = vsub.s32 1, %v83
    %v85 = vrot.slane %v76, %v84
    %v86 = vlaneseq
    %v87 = vshrl.u32 %v86, 7
    %v88 = vsub.s32 2, %v87
    %v89 = vrot.slane %v76, %v88
    %v90 = vlaneseq
    %v91 = vshrl.u32 %v90, 7
    %v92 = vsub.s32 3, %v91
    %v93 = vrot.slane %v76, %v92
    %v102 = vunpack.c.l.b16 %v72
    %v103 = vunpack.c.h.b16 %v72
    %v104 = vunpack.c.l.b16 %v73
    %v105 = vunpack.c.h.b16 %v73
    %v106 = vunpack.c.l.b16 %v74
    %v107 = vunpack.c.h.b16 %v74
    %v108 = vunpack.c.l.b16 %v75
    %v109 = vunpack.c.h.b16 %v75
    %v110 = vpack.c.b16 %v106, %v102
    %v111 = vpack.c.b16 %v107, %v103
    %v112 = vpack.c.b16 %v108, %v104
    %v113 = vpack.c.b16 %v109, %v105
    %vm118 = vcmask 130048
    %v120 = vsel %vm118, %v71, 0
    %122 = vmatprep.subr.bf16.mxu0 %v111
    %123 = vmatpush1.bf16.msra.mxu0 %v110
    %124 = vmatprep.subr.bf16.mxu0 0
    %125 = vmatpush1.bf16.msra.mxu0 0
    %126 = vmatprep.subr.bf16.mxu0 0
    %127 = vmatpush1.bf16.msra.mxu0 0
    %128 = vmatprep.subr.bf16.mxu0 0
    %129 = vmatpush1.bf16.msra.mxu0 0
    %130 = vmatprep.subr.bf16.mxu0 0
    %131 = vmatpush1.bf16.msra.mxu0 0
    %132 = vmatprep.subr.bf16.mxu0 0
    %133 = vmatpush1.bf16.msra.mxu0 0
    %134 = vmatprep.subr.bf16.mxu0 0
    %135 = vmatpush1.bf16.msra.mxu0 0
    %136 = vmatprep.subr.bf16.mxu0 0
    %137 = vmatpush1.bf16.msra.mxu0 0
    %138 = vmatprep.subr.bf16.mxu0 0
    %139 = vmatpush1.bf16.msra.mxu0 0
    %140 = vmatprep.subr.bf16.mxu0 0
    %141 = vmatpush1.bf16.msra.mxu0 0
    %142 = vmatprep.subr.bf16.mxu0 0
    %143 = vmatpush1.bf16.msra.mxu0 0
    %144 = vmatprep.subr.bf16.mxu0 0
    %145 = vmatpush1.bf16.msra.mxu0 0
    %146 = vmatprep.subr.bf16.mxu0 0
    %147 = vmatpush1.bf16.msra.mxu0 0
    %148 = vmatprep.subr.bf16.mxu0 0
    %149 = vmatpush1.bf16.msra.mxu0 0
    %150 = vmatprep.subr.bf16.mxu0 0
    %151 = vmatpush1.bf16.msra.mxu0 0
    %152 = vmatprep.subr.bf16.mxu0 0
    %153 = vmatpush1.bf16.msra.mxu0 0
    %154 = vmatprep.mubr.bf16.mxu0 0
    %155 = vmatmul.mubr.bf16.gmra.mrb[0].mxu0 %v120
    %v156 = vpop.f32.mrb[0].mxu0
    %v157 = vadd.f32 %v81, %v156
    %v158 = vpop.f32.mrb[0].mxu0
    %v159 = vadd.f32 %v85, %v158
    %v160 = vpop.f32.mrb[0].mxu0
    %v161 = vpop.f32.mrb[0].mxu0
    %162 = vdwg.mxu0
    %163 = vmatprep.subr.bf16.mxu0 %v113
    %164 = vmatpush1.bf16.msra.mxu0 %v112
    %165 = vmatprep.subr.bf16.mxu0 0
    %166 = vmatpush1.bf16.msra.mxu0 0
    %167 = vmatprep.subr.bf16.mxu0 0
    %168 = vmatpush1.bf16.msra.mxu0 0
    %169 = vmatprep.subr.bf16.mxu0 0
    %170 = vmatpush1.bf16.msra.mxu0 0
    %171 = vmatprep.subr.bf16.mxu0 0
    %172 = vmatpush1.bf16.msra.mxu0 0
    %173 = vmatprep.subr.bf16.mxu0 0
    %174 = vmatpush1.bf16.msra.mxu0 0
    %175 = vmatprep.subr.bf16.mxu0 0
    %176 = vmatpush1.bf16.msra.mxu0 0
    %177 = vmatprep.subr.bf16.mxu0 0
    %178 = vmatpush1.bf16.msra.mxu0 0
    %179 = vmatprep.subr.bf16.mxu0 0
    %180 = vmatpush1.bf16.msra.mxu0 0
    %181 = vmatprep.subr.bf16.mxu0 0
    %182 = vmatpush1.bf16.msra.mxu0 0
    %183 = vmatprep.subr.bf16.mxu0 0
    %184 = vmatpush1.bf16.msra.mxu0 0
    %185 = vmatprep.subr.bf16.mxu0 0
    %186 = vmatpush1.bf16.msra.mxu0 0
    %187 = vmatprep.subr.bf16.mxu0 0
    %188 = vmatpush1.bf16.msra.mxu0 0
    %189 = vmatprep.subr.bf16.mxu0 0
    %190 = vmatpush1.bf16.msra.mxu0 0
    %191 = vmatprep.subr.bf16.mxu0 0
    %192 = vmatpush1.bf16.msra.mxu0 0
    %193 = vmatprep.subr.bf16.mxu0 0
    %194 = vmatpush1.bf16.msra.mxu0 0
    %195 = vmatprep.mubr.bf16.mxu0 0
    %196 = vmatmul.mubr.bf16.gmra.mrb[0].mxu0 %v120
    %v197 = vpop.f32.mrb[0].mxu0
    %v198 = vadd.f32 %v89, %v197
    %v199 = vpop.f32.mrb[0].mxu0
    %v200 = vadd.f32 %v93, %v199
    %v201 = vpop.f32.mrb[0].mxu0
    %v202 = vpop.f32.mrb[0].mxu0
    %203 = vdwg.mxu0
    %v204 = vld [vmem:[%s3] sm:$0xf]
    %v206 = vlaneseq
    %v207 = vshrl.u32 %v206, 7
    %v208 = vsub.s32 0, %v207
    %v209 = vrot.slane %v204, %v208
    %v210 = vlaneseq
    %v211 = vshrl.u32 %v210, 7
    %v212 = vsub.s32 1, %v211
    %v213 = vrot.slane %v204, %v212
    %v214 = vlaneseq
    %v215 = vshrl.u32 %v214, 7
    %v216 = vsub.s32 2, %v215
    %v217 = vrot.slane %v204, %v216
    %v218 = vlaneseq
    %v219 = vshrl.u32 %v218, 7
    %v220 = vsub.s32 3, %v219
    %v221 = vrot.slane %v204, %v220
    %v226 = vmul.f32 %v157, %v209
    %v227 = vmul.f32 %v159, %v213
    %v228 = vmul.f32 %v198, %v217
    %v229 = vmul.f32 %v200, %v221
    %v230 = vmax.f32 %v157, %v226
    %v231 = vmax.f32 %v159, %v227
    %v232 = vmax.f32 %v198, %v228
    %v233 = vmax.f32 %v200, %v229
    %v234 = vpack.c.bf16 %v230, %v230
    %v235 = vpack.c.bf16 %v231, %v231
    %v236 = vpack.c.bf16 %v232, %v232
    %v237 = vpack.c.bf16 %v233, %v233
    %v238 = vld [vmem:[#allocation7] sm:$0xff]
    %v239 = vld [vmem:[#allocation7 + $0x8] sm:$0xff]
    %v240 = vld [vmem:[#allocation7 + $0x10] sm:$0xff]
    %v241 = vld [vmem:[#allocation7 + $0x18] sm:$0xff]
    %v242 = vld [vmem:[#allocation7 + $0x20] sm:$0xff]
    %v243 = vld [vmem:[#allocation7 + $0x28] sm:$0xff]
    %v244 = vld [vmem:[#allocation7 + $0x30] sm:$0xff]
    %v245 = vld [vmem:[#allocation7 + $0x38] sm:$0xff]
    %v246 = vld [vmem:[#allocation7 + $0x40] sm:$0xff]
    %v247 = vld [vmem:[#allocation7 + $0x48] sm:$0xff]
    %v248 = vld [vmem:[#allocation7 + $0x50] sm:$0xff]
    %v249 = vld [vmem:[#allocation7 + $0x58] sm:$0xff]
    %v250 = vld [vmem:[#allocation7 + $0x60] sm:$0xff]
    %v251 = vld [vmem:[#allocation7 + $0x68] sm:$0xff]
    %v252 = vld [vmem:[#allocation7 + $0x70] sm:$0xff]
    %v253 = vld [vmem:[#allocation7 + $0x78] sm:$0xff]
    %v254 = vld [vmem:[#allocation7 + $0x80] sm:$0xff]
    %v255 = vld [vmem:[#allocation7 + $0x88] sm:$0xff]
    %v256 = vld [vmem:[#allocation7 + $0x90] sm:$0xff]
    %v257 = vld [vmem:[#allocation7 + $0x98] sm:$0xff]
    %v258 = vld [vmem:[#allocation7 + $0xa0] sm:$0xff]
    %v259 = vld [vmem:[#allocation7 + $0xa8] sm:$0xff]
    %v260 = vld [vmem:[#allocation7 + $0xb0] sm:$0xff]
    %v261 = vld [vmem:[#allocation7 + $0xb8] sm:$0xff]
    %v262 = vld [vmem:[#allocation7 + $0xc0] sm:$0xff]
    %v263 = vld [vmem:[#allocation7 + $0xc8] sm:$0xff]
    %v264 = vld [vmem:[#allocation7 + $0xd0] sm:$0xff]
    %v265 = vld [vmem:[#allocation7 + $0xd8] sm:$0xff]
    %v266 = vld [vmem:[#allocation7 + $0xe0] sm:$0xff]
    %v267 = vld [vmem:[#allocation7 + $0xe8] sm:$0xff]
    %v268 = vld [vmem:[#allocation7 + $0xf0] sm:$0xff]
    %v269 = vld [vmem:[#allocation7 + $0xf8] sm:$0xff]
    %v270 = vld [vmem:[#allocation7 + $0x100] sm:$0xff]
    %v271 = vld [vmem:[#allocation7 + $0x108] sm:$0xff]
    %v272 = vld [vmem:[#allocation7 + $0x110] sm:$0xff]
    %v273 = vld [vmem:[#allocation7 + $0x118] sm:$0xff]
    %v274 = vld [vmem:[#allocation7 + $0x120] sm:$0xff]
    %v275 = vld [vmem:[#allocation7 + $0x128] sm:$0xff]
    %v276 = vld [vmem:[#allocation7 + $0x130] sm:$0xff]
    %v277 = vld [vmem:[#allocation7 + $0x138] sm:$0xff]
    %v278 = vld [vmem:[#allocation7 + $0x140] sm:$0xff]
    %v279 = vld [vmem:[#allocation7 + $0x148] sm:$0xff]
    %v280 = vld [vmem:[#allocation7 + $0x150] sm:$0xff]
    %v281 = vld [vmem:[#allocation7 + $0x158] sm:$0xff]
    %v282 = vld [vmem:[#allocation7 + $0x160] sm:$0xff]
    %v283 = vld [vmem:[#allocation7 + $0x168] sm:$0xff]
    %v284 = vld [vmem:[#allocation7 + $0x170] sm:$0xff]
    %v285 = vld [vmem:[#allocation7 + $0x178] sm:$0xff]
    %v286 = vld [vmem:[#allocation7 + $0x180] sm:$0xff]
    %v287 = vld [vmem:[#allocation7 + $0x188] sm:$0xff]
    %v288 = vld [vmem:[#allocation7 + $0x190] sm:$0xff]
    %v289 = vld [vmem:[#allocation7 + $0x198] sm:$0xff]
    %v290 = vld [vmem:[#allocation7 + $0x1a0] sm:$0xff]
    %v291 = vld [vmem:[#allocation7 + $0x1a8] sm:$0xff]
    %v292 = vld [vmem:[#allocation7 + $0x1b0] sm:$0xff]
    %v293 = vld [vmem:[#allocation7 + $0x1b8] sm:$0xff]
    %v294 = vld [vmem:[#allocation7 + $0x1c0] sm:$0xff]
    %v295 = vld [vmem:[#allocation7 + $0x1c8] sm:$0xff]
    %v296 = vld [vmem:[#allocation7 + $0x1d0] sm:$0xff]
    %v297 = vld [vmem:[#allocation7 + $0x1d8] sm:$0xff]
    %v298 = vld [vmem:[#allocation7 + $0x1e0] sm:$0xff]
    %v299 = vld [vmem:[#allocation7 + $0x1e8] sm:$0xff]
    %v300 = vld [vmem:[#allocation7 + $0x1f0] sm:$0xff]
    %v301 = vld [vmem:[#allocation7 + $0x1f8] sm:$0xff]
    %v302 = vld [vmem:[%s5] sm:$0x3]
    %v304 = vlaneseq
    %v305 = vshrl.u32 %v304, 7
    %v306 = vsub.s32 0, %v305
    %v307 = vrot.slane %v302, %v306
    %v308 = vlaneseq
    %v309 = vshrl.u32 %v308, 7
    %v310 = vsub.s32 1, %v309
    %v311 = vrot.slane %v302, %v310
    %v378 = vunpack.c.l.b16 %v238
    %v379 = vunpack.c.h.b16 %v238
    %v380 = vunpack.c.l.b16 %v239
    %v381 = vunpack.c.h.b16 %v239
    %v382 = vunpack.c.l.b16 %v240
    %v383 = vunpack.c.h.b16 %v240
    %v384 = vunpack.c.l.b16 %v241
    %v385 = vunpack.c.h.b16 %v241
    %v386 = vunpack.c.l.b16 %v242
    %v387 = vunpack.c.h.b16 %v242
    %v388 = vunpack.c.l.b16 %v243
    %v389 = vunpack.c.h.b16 %v243
    %v390 = vunpack.c.l.b16 %v244
    %v391 = vunpack.c.h.b16 %v244
    %v392 = vunpack.c.l.b16 %v245
    %v393 = vunpack.c.h.b16 %v245
    %v394 = vunpack.c.l.b16 %v246
    %v395 = vunpack.c.h.b16 %v246
    %v396 = vunpack.c.l.b16 %v247
    %v397 = vunpack.c.h.b16 %v247
    %v398 = vunpack.c.l.b16 %v248
    %v399 = vunpack.c.h.b16 %v248
    %v400 = vunpack.c.l.b16 %v249
    %v401 = vunpack.c.h.b16 %v249
    %v402 = vunpack.c.l.b16 %v250
    %v403 = vunpack.c.h.b16 %v250
    %v404 = vunpack.c.l.b16 %v251
    %v405 = vunpack.c.h.b16 %v251
    %v406 = vunpack.c.l.b16 %v252
    %v407 = vunpack.c.h.b16 %v252
    %v408 = vunpack.c.l.b16 %v253
    %v409 = vunpack.c.h.b16 %v253
    %v410 = vunpack.c.l.b16 %v254
    %v411 = vunpack.c.h.b16 %v254
    %v412 = vunpack.c.l.b16 %v255
    %v413 = vunpack.c.h.b16 %v255
    %v414 = vunpack.c.l.b16 %v256
    %v415 = vunpack.c.h.b16 %v256
    %v416 = vunpack.c.l.b16 %v257
    %v417 = vunpack.c.h.b16 %v257
    %v418 = vunpack.c.l.b16 %v258
    %v419 = vunpack.c.h.b16 %v258
    %v420 = vunpack.c.l.b16 %v259
    %v421 = vunpack.c.h.b16 %v259
    %v422 = vunpack.c.l.b16 %v260
    %v423 = vunpack.c.h.b16 %v260
    %v424 = vunpack.c.l.b16 %v261
    %v425 = vunpack.c.h.b16 %v261
    %v426 = vunpack.c.l.b16 %v262
    %v427 = vunpack.c.h.b16 %v262
    %v428 = vunpack.c.l.b16 %v263
    %v429 = vunpack.c.h.b16 %v263
    %v430 = vunpack.c.l.b16 %v264
    %v431 = vunpack.c.h.b16 %v264
    %v432 = vunpack.c.l.b16 %v265
    %v433 = vunpack.c.h.b16 %v265
    %v434 = vunpack.c.l.b16 %v266
    %v435 = vunpack.c.h.b16 %v266
    %v436 = vunpack.c.l.b16 %v267
    %v437 = vunpack.c.h.b16 %v267
    %v438 = vunpack.c.l.b16 %v268
    %v439 = vunpack.c.h.b16 %v268
    %v440 = vunpack.c.l.b16 %v269
    %v441 = vunpack.c.h.b16 %v269
    %v442 = vunpack.c.l.b16 %v270
    %v443 = vunpack.c.h.b16 %v270
    %v444 = vunpack.c.l.b16 %v271
    %v445 = vunpack.c.h.b16 %v271
    %v446 = vunpack.c.l.b16 %v272
    %v447 = vunpack.c.h.b16 %v272
    %v448 = vunpack.c.l.b16 %v273
    %v449 = vunpack.c.h.b16 %v273
    %v450 = vunpack.c.l.b16 %v274
    %v451 = vunpack.c.h.b16 %v274
    %v452 = vunpack.c.l.b16 %v275
    %v453 = vunpack.c.h.b16 %v275
    %v454 = vunpack.c.l.b16 %v276
    %v455 = vunpack.c.h.b16 %v276
    %v456 = vunpack.c.l.b16 %v277
    %v457 = vunpack.c.h.b16 %v277
    %v458 = vunpack.c.l.b16 %v278
    %v459 = vunpack.c.h.b16 %v278
    %v460 = vunpack.c.l.b16 %v279
    %v461 = vunpack.c.h.b16 %v279
    %v462 = vunpack.c.l.b16 %v280
    %v463 = vunpack.c.h.b16 %v280
    %v464 = vunpack.c.l.b16 %v281
    %v465 = vunpack.c.h.b16 %v281
    %v466 = vunpack.c.l.b16 %v282
    %v467 = vunpack.c.h.b16 %v282
    %v468 = vunpack.c.l.b16 %v283
    %v469 = vunpack.c.h.b16 %v283
    %v470 = vunpack.c.l.b16 %v284
    %v471 = vunpack.c.h.b16 %v284
    %v472 = vunpack.c.l.b16 %v285
    %v473 = vunpack.c.h.b16 %v285
    %v474 = vunpack.c.l.b16 %v286
    %v475 = vunpack.c.h.b16 %v286
    %v476 = vunpack.c.l.b16 %v287
    %v477 = vunpack.c.h.b16 %v287
    %v478 = vunpack.c.l.b16 %v288
    %v479 = vunpack.c.h.b16 %v288
    %v480 = vunpack.c.l.b16 %v289
    %v481 = vunpack.c.h.b16 %v289
    %v482 = vunpack.c.l.b16 %v290
    %v483 = vunpack.c.h.b16 %v290
    %v484 = vunpack.c.l.b16 %v291
    %v485 = vunpack.c.h.b16 %v291
    %v486 = vunpack.c.l.b16 %v292
    %v487 = vunpack.c.h.b16 %v292
    %v488 = vunpack.c.l.b16 %v293
    %v489 = vunpack.c.h.b16 %v293
    %v490 = vunpack.c.l.b16 %v294
    %v491 = vunpack.c.h.b16 %v294
    %v492 = vunpack.c.l.b16 %v295
    %v493 = vunpack.c.h.b16 %v295
    %v494 = vunpack.c.l.b16 %v296
    %v495 = vunpack.c.h.b16 %v296
    %v496 = vunpack.c.l.b16 %v297
    %v497 = vunpack.c.h.b16 %v297
    %v498 = vunpack.c.l.b16 %v298
    %v499 = vunpack.c.h.b16 %v298
    %v500 = vunpack.c.l.b16 %v299
    %v501 = vunpack.c.h.b16 %v299
    %v502 = vunpack.c.l.b16 %v300
    %v503 = vunpack.c.h.b16 %v300
    %v504 = vunpack.c.l.b16 %v301
    %v505 = vunpack.c.h.b16 %v301
    %v506 = vpack.c.b16 %v380, %v378
    %v507 = vpack.c.b16 %v381, %v379
    %v508 = vpack.c.b16 %v384, %v382
    %v509 = vpack.c.b16 %v385, %v383
    %v510 = vpack.c.b16 %v388, %v386
    %v511 = vpack.c.b16 %v389, %v387
    %v512 = vpack.c.b16 %v392, %v390
    %v513 = vpack.c.b16 %v393, %v391
    %v514 = vpack.c.b16 %v396, %v394
    %v515 = vpack.c.b16 %v397, %v395
    %v516 = vpack.c.b16 %v400, %v398
    %v517 = vpack.c.b16 %v401, %v399
    %v518 = vpack.c.b16 %v404, %v402
    %v519 = vpack.c.b16 %v405, %v403
    %v520 = vpack.c.b16 %v408, %v406
    %v521 = vpack.c.b16 %v409, %v407
    %v522 = vpack.c.b16 %v412, %v410
    %v523 = vpack.c.b16 %v413, %v411
    %v524 = vpack.c.b16 %v416, %v414
    %v525 = vpack.c.b16 %v417, %v415
    %v526 = vpack.c.b16 %v420, %v418
    %v527 = vpack.c.b16 %v421, %v419
    %v528 = vpack.c.b16 %v424, %v422
    %v529 = vpack.c.b16 %v425, %v423
    %v530 = vpack.c.b16 %v428, %v426
    %v531 = vpack.c.b16 %v429, %v427
    %v532 = vpack.c.b16 %v432, %v430
    %v533 = vpack.c.b16 %v433, %v431
    %v534 = vpack.c.b16 %v436, %v434
    %v535 = vpack.c.b16 %v437, %v435
    %v536 = vpack.c.b16 %v440, %v438
    %v537 = vpack.c.b16 %v441, %v439
    %v538 = vpack.c.b16 %v444, %v442
    %v539 = vpack.c.b16 %v445, %v443
    %v540 = vpack.c.b16 %v448, %v446
    %v541 = vpack.c.b16 %v449, %v447
    %v542 = vpack.c.b16 %v452, %v450
    %v543 = vpack.c.b16 %v453, %v451
    %v544 = vpack.c.b16 %v456, %v454
    %v545 = vpack.c.b16 %v457, %v455
    %v546 = vpack.c.b16 %v460, %v458
    %v547 = vpack.c.b16 %v461, %v459
    %v548 = vpack.c.b16 %v464, %v462
    %v549 = vpack.c.b16 %v465, %v463
    %v550 = vpack.c.b16 %v468, %v466
    %v551 = vpack.c.b16 %v469, %v467
    %v552 = vpack.c.b16 %v472, %v470
    %v553 = vpack.c.b16 %v473, %v471
    %v554 = vpack.c.b16 %v476, %v474
    %v555 = vpack.c.b16 %v477, %v475
    %v556 = vpack.c.b16 %v480, %v478
    %v557 = vpack.c.b16 %v481, %v479
    %v558 = vpack.c.b16 %v484, %v482
    %v559 = vpack.c.b16 %v485, %v483
    %v560 = vpack.c.b16 %v488, %v486
    %v561 = vpack.c.b16 %v489, %v487
    %v562 = vpack.c.b16 %v492, %v490
    %v563 = vpack.c.b16 %v493, %v491
    %v564 = vpack.c.b16 %v496, %v494
    %v565 = vpack.c.b16 %v497, %v495
    %v566 = vpack.c.b16 %v500, %v498
    %v567 = vpack.c.b16 %v501, %v499
    %v568 = vpack.c.b16 %v504, %v502
    %v569 = vpack.c.b16 %v505, %v503
    %634 = vmatprep.subr.bf16.mxu0 %v507
    %635 = vmatpush1.bf16.msra.mxu0 %v506
    %636 = vmatprep.subr.bf16.mxu0 %v509
    %637 = vmatpush1.bf16.msra.mxu0 %v508
    %638 = vmatprep.subr.bf16.mxu0 %v511
    %639 = vmatpush1.bf16.msra.mxu0 %v510
    %640 = vmatprep.subr.bf16.mxu0 %v513
    %641 = vmatpush1.bf16.msra.mxu0 %v512
    %642 = vmatprep.subr.bf16.mxu0 %v515
    %643 = vmatpush1.bf16.msra.mxu0 %v514
    %644 = vmatprep.subr.bf16.mxu0 %v517
    %645 = vmatpush1.bf16.msra.mxu0 %v516
    %646 = vmatprep.subr.bf16.mxu0 %v519
    %647 = vmatpush1.bf16.msra.mxu0 %v518
    %648 = vmatprep.subr.bf16.mxu0 %v521
    %649 = vmatpush1.bf16.msra.mxu0 %v520
    %650 = vmatprep.subr.bf16.mxu0 %v523
    %651 = vmatpush1.bf16.msra.mxu0 %v522
    %652 = vmatprep.subr.bf16.mxu0 %v525
    %653 = vmatpush1.bf16.msra.mxu0 %v524
    %654 = vmatprep.subr.bf16.mxu0 %v527
    %655 = vmatpush1.bf16.msra.mxu0 %v526
    %656 = vmatprep.subr.bf16.mxu0 %v529
    %657 = vmatpush1.bf16.msra.mxu0 %v528
    %658 = vmatprep.subr.bf16.mxu0 %v531
    %659 = vmatpush1.bf16.msra.mxu0 %v530
    %660 = vmatprep.subr.bf16.mxu0 %v533
    %661 = vmatpush1.bf16.msra.mxu0 %v532
    %662 = vmatprep.subr.bf16.mxu0 %v535
    %663 = vmatpush1.bf16.msra.mxu0 %v534
    %664 = vmatprep.subr.bf16.mxu0 %v537
    %665 = vmatpush1.bf16.msra.mxu0 %v536
    %666 = vmatprep.mubr.bf16.mxu0 %v235
    %667 = vmatmul.mubr.bf16.gmra.mrb[0].mxu0 %v234
    %v668 = vpop.f32.mrb[0].mxu0
    %v669 = vadd.f32 %v307, %v668
    %v670 = vpop.f32.mrb[0].mxu0
    %v671 = vadd.f32 %v311, %v670
    %v672 = vpop.f32.mrb[0].mxu0
    %v673 = vpop.f32.mrb[0].mxu0
    %674 = vdwg.mxu0
    %675 = vmatprep.subr.bf16.mxu0 %v539
    %676 = vmatpush1.bf16.msra.mxu0 %v538
    %677 = vmatprep.subr.bf16.mxu0 %v541
    %678 = vmatpush1.bf16.msra.mxu0 %v540
    %679 = vmatprep.subr.bf16.mxu0 %v543
    %680 = vmatpush1.bf16.msra.mxu0 %v542
    %681 = vmatprep.subr.bf16.mxu0 %v545
    %682 = vmatpush1.bf16.msra.mxu0 %v544
    %683 = vmatprep.subr.bf16.mxu0 %v547
    %684 = vmatpush1.bf16.msra.mxu0 %v546
    %685 = vmatprep.subr.bf16.mxu0 %v549
    %686 = vmatpush1.bf16.msra.mxu0 %v548
    %687 = vmatprep.subr.bf16.mxu0 %v551
    %688 = vmatpush1.bf16.msra.mxu0 %v550
    %689 = vmatprep.subr.bf16.mxu0 %v553
    %690 = vmatpush1.bf16.msra.mxu0 %v552
    %691 = vmatprep.subr.bf16.mxu0 %v555
    %692 = vmatpush1.bf16.msra.mxu0 %v554
    %693 = vmatprep.subr.bf16.mxu0 %v557
    %694 = vmatpush1.bf16.msra.mxu0 %v556
    %695 = vmatprep.subr.bf16.mxu0 %v559
    %696 = vmatpush1.bf16.msra.mxu0 %v558
    %697 = vmatprep.subr.bf16.mxu0 %v561
    %698 = vmatpush1.bf16.msra.mxu0 %v560
    %699 = vmatprep.subr.bf16.mxu0 %v563
    %700 = vmatpush1.bf16.msra.mxu0 %v562
    %701 = vmatprep.subr.bf16.mxu0 %v565
    %702 = vmatpush1.bf16.msra.mxu0 %v564
    %703 = vmatprep.subr.bf16.mxu0 %v567
    %704 = vmatpush1.bf16.msra.mxu0 %v566
    %705 = vmatprep.subr.bf16.mxu0 %v569
    %706 = vmatpush1.bf16.msra.mxu0 %v568
    %707 = vmatprep.mubr.bf16.mxu0 %v237
    %708 = vmatmul.mubr.bf16.gmra.mrb[0].mxu0 %v236
    %v709 = vpop.f32.mrb[0].mxu0
    %v710 = vadd.f32 %v669, %v709
    %v711 = vpop.f32.mrb[0].mxu0
    %v712 = vadd.f32 %v671, %v711
    %v713 = vpop.f32.mrb[0].mxu0
    %v714 = vpop.f32.mrb[0].mxu0
    %715 = vdwg.mxu0
    %v716 = vmax.f32 %v710, 0.0
    %v717 = vmax.f32 %v712, 0.0
    %v718 = vld [vmem:[%s6] sm:$0x3]
    %v720 = vlaneseq
    %v721 = vshrl.u32 %v720, 7
    %v722 = vsub.s32 0, %v721
    %v723 = vrot.slane %v718, %v722
    %v724 = vlaneseq
    %v725 = vshrl.u32 %v724, 7
    %v726 = vsub.s32 1, %v725
    %v727 = vrot.slane %v718, %v726
    %v730 = vmul.f32 %v716, %v723
    %v731 = vmul.f32 %v717, %v727
    %v732 = vadd.f32 %v730, %v731
    %733 = vadd.xlane.f32.xlu0 %v732
    %v734 = vpop.xlane.xlu0 %733
    %s735 = sld [smem:[#allocation2]]
    %v736 = vstv %s735
    %v737 = vadd.f32 %v734, %v736
    %vm738 = vcmask 7168
    %739 = vst.msk [vmem:[%s8] sm:$0xff] %vm738, %v737
    // Predicated region
    $region46: #{tpu_custom_call.1} parent=1 // pred_check
      _
    $region47: #{tpu_custom_call.1} parent=1 // pred_check_branch
      %741 = sbr.rel (0) target = $region49
    $region48: #{tpu_custom_call.1} parent=1 // pred_region
      _
    $region49: #{tpu_custom_call.1} parent=1 // pred_fallthru
      _
    // Predicated region
    $region50: #{tpu_custom_call.1} parent=1 // pred_check
      _
    $region51: #{tpu_custom_call.1} parent=1 // pred_check_branch
      %743 = sbr.rel (0) target = $region53
    $region52: #{tpu_custom_call.1} parent=1 // pred_region
      _
    $region53: #{tpu_custom_call.1} parent=1 // pred_fallthru
      _
    %744 = vsyncpa [#allocation4], 1
    %745 = vsyncpa [#allocation6], 1

</llo_original>
